<compile_context>
chip_gen: v5e
topology: v5e:2x2
jax: 0.10.0
libtpu: 0.0.40
codegen_flags: <defaults>
</compile_context>

<pallas_src>
import jax
import jax.numpy as jnp
from jax.experimental import pallas as pl
from jax.experimental.pallas import tpu as pltpu


def _round_up(v, m):
    return (v + m - 1) // m * m


def rgcn_kernel(a_ref, x_ref, w_ref, b_ref, o_ref):
    """Whole (tiny) RGCN layer in a single grid step, two MXU stages.

    a_ref: (Np, Rp*Np)   per-relation adjacency blocks concatenated along lanes
                         (last block is the identity -> root/self-loop term)
    x_ref: (Np, Gp)      node features (zero-padded)
    w_ref: (Rp, Gp, Hp)  per-relation weights (last one is `root`)
    b_ref: (1, Hp)       bias
    o_ref: (Np, Hp)      lane-dense output
    """
    x = x_ref[...]
    n_rel = w_ref.shape[0]

    # Stage 1: Y[r*Np + j, h] = (X @ W_r)[j, h]   (statically unrolled, MXU)
    y = jnp.concatenate(
        [
            jnp.dot(x, w_ref[r], preferred_element_type=jnp.float32)
            for r in range(n_rel)
        ],
        axis=0,
    )

    # Stage 2: one wide, 144-deep contraction + bias, written lane-dense.
    o_ref[...] = (
        jnp.dot(a_ref[...], y, preferred_element_type=jnp.float32) + b_ref[...]
    )


def rgcn_forward(node_features, edge_index, edge_type, params, num_relations):
    """GCN.forward == RGCNConv(g_dim, h1_dim, num_relations, num_bases=10)."""
    x = node_features.astype(jnp.float32)
    N, G = x.shape
    basis = params["basis"].astype(jnp.float32)
    comp = params["comp"].astype(jnp.float32)
    root = params["root"].astype(jnp.float32)
    bias = params["bias"].astype(jnp.float32)
    H = root.shape[1]
    R = num_relations
    Rp = R + 1  # extra "relation": identity adjacency + root weight (self-loop)

    # --- glue: dense normalized adjacency per relation (mean aggregation) ---
    src, dst = edge_index[0], edge_index[1]
    adj = jnp.zeros((R, N, N), jnp.float32).at[edge_type, dst, src].add(1.0)
    deg = adj.sum(axis=2, keepdims=True)
    adj = adj / jnp.maximum(deg, 1.0)  # rows with no incoming edges stay zero

    # --- glue: basis decomposition -> per-relation weight, root appended ---
    weight = jnp.einsum("rb,bio->rio", comp, basis)           # (R, G, H)
    w_aug = jnp.concatenate([weight, root[None]], axis=0)     # (Rp, G, H)

    # --- padding for TPU-friendly layouts ---
    Np = _round_up(N, 8)      # sublane multiple
    Gp = _round_up(G, 128)    # lane-dense features / contraction
    Hp = _round_up(H, 128)    # lane-dense output (unmasked stores)
    K = Rp * Np

    adj_aug = jnp.concatenate([adj, jnp.eye(N, dtype=jnp.float32)[None]], axis=0)
    adj_aug = jnp.pad(adj_aug, ((0, 0), (0, Np - N), (0, Np - N)))
    # relations concatenated along lanes: a_cat[i, r*Np + j] = adj_aug[r, i, j]
    a_cat = jnp.transpose(adj_aug, (1, 0, 2)).reshape(Np, K)

    x_p = jnp.pad(x, ((0, Np - N), (0, Gp - G)))
    w_p = jnp.pad(w_aug, ((0, 0), (0, Gp - G), (0, Hp - H)))
    b_p = jnp.pad(bias, (0, Hp - H)).reshape(1, Hp)

    out = pl.pallas_call(
        rgcn_kernel,
        out_shape=jax.ShapeDtypeStruct((Np, Hp), jnp.float32),
        grid=(1,),
        in_specs=[
            pl.BlockSpec((Np, K), lambda i: (0, 0)),          # A_cat
            pl.BlockSpec((Np, Gp), lambda i: (0, 0)),         # X
            pl.BlockSpec((Rp, Gp, Hp), lambda i: (0, 0, 0)),  # weights (+root)
            pl.BlockSpec((1, Hp), lambda i: (0, 0)),          # bias
        ],
        out_specs=pl.BlockSpec((Np, Hp), lambda i: (0, 0)),
        compiler_params=pltpu.CompilerParams(
            dimension_semantics=("arbitrary",)
        ),
    )(a_cat, x_p, w_p, b_p)

    return out[:N, :H]


def reference_forward(node_features, edge_index, edge_type, params, num_relations):
    """Pure-JAX reference of the same math (for a correctness check)."""
    x = node_features.astype(jnp.float32)
    N, G = x.shape
    R = num_relations
    src, dst = edge_index[0], edge_index[1]
    adj = jnp.zeros((R, N, N), jnp.float32).at[edge_type, dst, src].add(1.0)
    deg = adj.sum(axis=2, keepdims=True)
    adj = adj / jnp.maximum(deg, 1.0)
    weight = jnp.einsum("rb,bio->rio", params["comp"], params["basis"])
    out = jnp.einsum("rij,jg,rgh->ih", adj, x, weight)
    out = out + x @ params["root"] + params["bias"][None, :]
    return out


if __name__ == "__main__":
    # module hyper-params (small, consistent with GCN.__init__)
    n_speakers = 2
    num_relations = 2 * n_speakers**2  # 8
    num_bases = 10
    g_dim, h1_dim = 32, 32
    N, E = 16, 40  # nodes, edges

    key = jax.random.PRNGKey(0)
    k_x, k_src, k_dst, k_et, k_b, k_c, k_r = jax.random.split(key, 7)

    # inputs
    node_features = jax.random.normal(k_x, (N, g_dim), jnp.float32)
    edge_index = jnp.stack(
        [
            jax.random.randint(k_src, (E,), 0, N),
            jax.random.randint(k_dst, (E,), 0, N),
        ],
        axis=0,
    ).astype(jnp.int32)
    edge_type = jax.random.randint(k_et, (E,), 0, num_relations).astype(jnp.int32)

    # deterministic parameter init (glorot-ish scale; bias zeros like PyG)
    params = {
        "basis": jax.random.normal(k_b, (num_bases, g_dim, h1_dim), jnp.float32)
        * (1.0 / jnp.sqrt(g_dim)),
        "comp": jax.random.normal(k_c, (num_relations, num_bases), jnp.float32)
        * (1.0 / jnp.sqrt(num_bases)),
        "root": jax.random.normal(k_r, (g_dim, h1_dim), jnp.float32)
        * (1.0 / jnp.sqrt(g_dim)),
        "bias": jnp.zeros((h1_dim,), jnp.float32),
    }

    out = rgcn_forward(node_features, edge_index, edge_type, params, num_relations)
    out = jax.block_until_ready(out)

    ref = reference_forward(node_features, edge_index, edge_type, params, num_relations)
    assert out.shape == (N, h1_dim)
    assert jnp.allclose(out, ref, atol=1e-4, rtol=1e-4), "mismatch vs reference"

    print("KERNEL_OK")
</pallas_src>

<mosaic_0001>
module attributes {stable_mosaic.version = 11 : i64} {
  func.func @rgcn_kernel(%arg0: i32, %arg1: memref<16x144xf32, #tpu.memory_space<vmem>>, %arg2: memref<16x128xf32, #tpu.memory_space<vmem>>, %arg3: memref<9x128x128xf32, #tpu.memory_space<vmem>>, %arg4: memref<1x128xf32, #tpu.memory_space<vmem>>, %arg5: memref<16x128xf32, #tpu.memory_space<vmem>>) attributes {dimension_semantics = [#tpu.dimension_semantics<arbitrary>], iteration_bounds = array<i64: 1>, scalar_prefetch = 0 : i64, scratch_operands = 0 : i64, tpu.core_type = #tpu.core_type<tc>, window_params = [{pipeline_mode = #tpu.pipeline_mode<synchronous>, transform_indices = @transform_0, window_bounds = array<i64: 16, 144>}, {pipeline_mode = #tpu.pipeline_mode<synchronous>, transform_indices = @transform_1, window_bounds = array<i64: 16, 128>}, {pipeline_mode = #tpu.pipeline_mode<synchronous>, transform_indices = @transform_2, window_bounds = array<i64: 9, 128, 128>}, {pipeline_mode = #tpu.pipeline_mode<synchronous>, transform_indices = @transform_3, window_bounds = array<i64: 1, 128>}, {pipeline_mode = #tpu.pipeline_mode<synchronous>, transform_indices = @transform_4, window_bounds = array<i64: 16, 128>}]} {
    %c0 = arith.constant 0 : index
    %c0_0 = arith.constant 0 : index
    %0 = vector.load %arg2[%c0, %c0_0] : memref<16x128xf32, #tpu.memory_space<vmem>>, vector<16x128xf32>
    %c0_1 = arith.constant 0 : index
    %c0_2 = arith.constant 0 : index
    %c0_3 = arith.constant 0 : index
    %1 = vector.load %arg3[%c0_1, %c0_2, %c0_3] : memref<9x128x128xf32, #tpu.memory_space<vmem>>, vector<1x128x128xf32>
    %2 = vector.shape_cast %1 : vector<1x128x128xf32> to vector<128x128xf32>
    %cst = arith.constant dense<0.000000e+00> : vector<16x128xf32>
    %3 = tpu.matmul %0, %2, %cst {dimension_numbers = #tpu.dot_dimension_numbers<[1], [0], [0], [1], [0, 0, 1, 1], [], []>} : vector<16x128xf32>, vector<128x128xf32>, vector<16x128xf32> -> vector<16x128xf32>
    %c1 = arith.constant 1 : index
    %c0_4 = arith.constant 0 : index
    %c0_5 = arith.constant 0 : index
    %4 = vector.load %arg3[%c1, %c0_4, %c0_5] : memref<9x128x128xf32, #tpu.memory_space<vmem>>, vector<1x128x128xf32>
    %5 = vector.shape_cast %4 : vector<1x128x128xf32> to vector<128x128xf32>
    %cst_6 = arith.constant dense<0.000000e+00> : vector<16x128xf32>
    %6 = tpu.matmul %0, %5, %cst_6 {dimension_numbers = #tpu.dot_dimension_numbers<[1], [0], [0], [1], [0, 0, 1, 1], [], []>} : vector<16x128xf32>, vector<128x128xf32>, vector<16x128xf32> -> vector<16x128xf32>
    %c2 = arith.constant 2 : index
    %c0_7 = arith.constant 0 : index
    %c0_8 = arith.constant 0 : index
    %7 = vector.load %arg3[%c2, %c0_7, %c0_8] : memref<9x128x128xf32, #tpu.memory_space<vmem>>, vector<1x128x128xf32>
    %8 = vector.shape_cast %7 : vector<1x128x128xf32> to vector<128x128xf32>
    %cst_9 = arith.constant dense<0.000000e+00> : vector<16x128xf32>
    %9 = tpu.matmul %0, %8, %cst_9 {dimension_numbers = #tpu.dot_dimension_numbers<[1], [0], [0], [1], [0, 0, 1, 1], [], []>} : vector<16x128xf32>, vector<128x128xf32>, vector<16x128xf32> -> vector<16x128xf32>
    %c3 = arith.constant 3 : index
    %c0_10 = arith.constant 0 : index
    %c0_11 = arith.constant 0 : index
    %10 = vector.load %arg3[%c3, %c0_10, %c0_11] : memref<9x128x128xf32, #tpu.memory_space<vmem>>, vector<1x128x128xf32>
    %11 = vector.shape_cast %10 : vector<1x128x128xf32> to vector<128x128xf32>
    %cst_12 = arith.constant dense<0.000000e+00> : vector<16x128xf32>
    %12 = tpu.matmul %0, %11, %cst_12 {dimension_numbers = #tpu.dot_dimension_numbers<[1], [0], [0], [1], [0, 0, 1, 1], [], []>} : vector<16x128xf32>, vector<128x128xf32>, vector<16x128xf32> -> vector<16x128xf32>
    %c4 = arith.constant 4 : index
    %c0_13 = arith.constant 0 : index
    %c0_14 = arith.constant 0 : index
    %13 = vector.load %arg3[%c4, %c0_13, %c0_14] : memref<9x128x128xf32, #tpu.memory_space<vmem>>, vector<1x128x128xf32>
    %14 = vector.shape_cast %13 : vector<1x128x128xf32> to vector<128x128xf32>
    %cst_15 = arith.constant dense<0.000000e+00> : vector<16x128xf32>
    %15 = tpu.matmul %0, %14, %cst_15 {dimension_numbers = #tpu.dot_dimension_numbers<[1], [0], [0], [1], [0, 0, 1, 1], [], []>} : vector<16x128xf32>, vector<128x128xf32>, vector<16x128xf32> -> vector<16x128xf32>
    %c5 = arith.constant 5 : index
    %c0_16 = arith.constant 0 : index
    %c0_17 = arith.constant 0 : index
    %16 = vector.load %arg3[%c5, %c0_16, %c0_17] : memref<9x128x128xf32, #tpu.memory_space<vmem>>, vector<1x128x128xf32>
    %17 = vector.shape_cast %16 : vector<1x128x128xf32> to vector<128x128xf32>
    %cst_18 = arith.constant dense<0.000000e+00> : vector<16x128xf32>
    %18 = tpu.matmul %0, %17, %cst_18 {dimension_numbers = #tpu.dot_dimension_numbers<[1], [0], [0], [1], [0, 0, 1, 1], [], []>} : vector<16x128xf32>, vector<128x128xf32>, vector<16x128xf32> -> vector<16x128xf32>
    %c6 = arith.constant 6 : index
    %c0_19 = arith.constant 0 : index
    %c0_20 = arith.constant 0 : index
    %19 = vector.load %arg3[%c6, %c0_19, %c0_20] : memref<9x128x128xf32, #tpu.memory_space<vmem>>, vector<1x128x128xf32>
    %20 = vector.shape_cast %19 : vector<1x128x128xf32> to vector<128x128xf32>
    %cst_21 = arith.constant dense<0.000000e+00> : vector<16x128xf32>
    %21 = tpu.matmul %0, %20, %cst_21 {dimension_numbers = #tpu.dot_dimension_numbers<[1], [0], [0], [1], [0, 0, 1, 1], [], []>} : vector<16x128xf32>, vector<128x128xf32>, vector<16x128xf32> -> vector<16x128xf32>
    %c7 = arith.constant 7 : index
    %c0_22 = arith.constant 0 : index
    %c0_23 = arith.constant 0 : index
    %22 = vector.load %arg3[%c7, %c0_22, %c0_23] : memref<9x128x128xf32, #tpu.memory_space<vmem>>, vector<1x128x128xf32>
    %23 = vector.shape_cast %22 : vector<1x128x128xf32> to vector<128x128xf32>
    %cst_24 = arith.constant dense<0.000000e+00> : vector<16x128xf32>
    %24 = tpu.matmul %0, %23, %cst_24 {dimension_numbers = #tpu.dot_dimension_numbers<[1], [0], [0], [1], [0, 0, 1, 1], [], []>} : vector<16x128xf32>, vector<128x128xf32>, vector<16x128xf32> -> vector<16x128xf32>
    %c8 = arith.constant 8 : index
    %c0_25 = arith.constant 0 : index
    %c0_26 = arith.constant 0 : index
    %25 = vector.load %arg3[%c8, %c0_25, %c0_26] : memref<9x128x128xf32, #tpu.memory_space<vmem>>, vector<1x128x128xf32>
    %26 = vector.shape_cast %25 : vector<1x128x128xf32> to vector<128x128xf32>
    %cst_27 = arith.constant dense<0.000000e+00> : vector<16x128xf32>
    %27 = tpu.matmul %0, %26, %cst_27 {dimension_numbers = #tpu.dot_dimension_numbers<[1], [0], [0], [1], [0, 0, 1, 1], [], []>} : vector<16x128xf32>, vector<128x128xf32>, vector<16x128xf32> -> vector<16x128xf32>
    %28 = tpu.concatenate %3, %6, %9, %12, %15, %18, %21, %24, %27 in 0 : vector<16x128xf32>, vector<16x128xf32>, vector<16x128xf32>, vector<16x128xf32>, vector<16x128xf32>, vector<16x128xf32>, vector<16x128xf32>, vector<16x128xf32>, vector<16x128xf32> -> vector<144x128xf32>
    %c0_28 = arith.constant 0 : index
    %c0_29 = arith.constant 0 : index
    %29 = vector.load %arg1[%c0_28, %c0_29] : memref<16x144xf32, #tpu.memory_space<vmem>>, vector<16x144xf32>
    %cst_30 = arith.constant dense<0.000000e+00> : vector<16x128xf32>
    %30 = tpu.matmul %29, %28, %cst_30 {dimension_numbers = #tpu.dot_dimension_numbers<[1], [0], [0], [1], [0, 0, 1, 1], [], []>} : vector<16x144xf32>, vector<144x128xf32>, vector<16x128xf32> -> vector<16x128xf32>
    %c0_31 = arith.constant 0 : index
    %c0_32 = arith.constant 0 : index
    %31 = vector.load %arg4[%c0_31, %c0_32] : memref<1x128xf32, #tpu.memory_space<vmem>>, vector<1x128xf32>
    %32 = vector.broadcast %31 : vector<1x128xf32> to vector<16x128xf32>
    %33 = arith.addf %30, %32 : vector<16x128xf32>
    %c0_33 = arith.constant 0 : index
    %c0_34 = arith.constant 0 : index
    %34 = vector.load %arg5[%c0_33, %c0_34] : memref<16x128xf32, #tpu.memory_space<vmem>>, vector<16x128xf32>
    tpu.vector_store %arg5[%c0_33, %c0_34], %33 {strides = array<i32>} : memref<16x128xf32, #tpu.memory_space<vmem>>, vector<16x128xf32>,
    return
  }
  func.func @transform_0(%arg0: i32) -> (i32, i32) {
    %c0_i32 = arith.constant 0 : i32
    %c0_i32_0 = arith.constant 0 : i32
    %c0_i32_1 = arith.constant 0 : i32
    return %c0_i32, %c0_i32_0 : i32, i32
  }
  func.func @transform_1(%arg0: i32) -> (i32, i32) {
    %c0_i32 = arith.constant 0 : i32
    %c0_i32_0 = arith.constant 0 : i32
    %c0_i32_1 = arith.constant 0 : i32
    return %c0_i32, %c0_i32_0 : i32, i32
  }
  func.func @transform_2(%arg0: i32) -> (i32, i32, i32) {
    %c0_i32 = arith.constant 0 : i32
    %c0_i32_0 = arith.constant 0 : i32
    %c0_i32_1 = arith.constant 0 : i32
    %c0_i32_2 = arith.constant 0 : i32
    return %c0_i32, %c0_i32_0, %c0_i32_1 : i32, i32, i32
  }
  func.func @transform_3(%arg0: i32) -> (i32, i32) {
    %c0_i32 = arith.constant 0 : i32
    %c0_i32_0 = arith.constant 0 : i32
    %c0_i32_1 = arith.constant 0 : i32
    return %c0_i32, %c0_i32_0 : i32, i32
  }
  func.func @transform_4(%arg0: i32) -> (i32, i32) {
    %c0_i32 = arith.constant 0 : i32
    %c0_i32_0 = arith.constant 0 : i32
    %c0_i32_1 = arith.constant 0 : i32
    return %c0_i32, %c0_i32_0 : i32, i32
  }
}

</mosaic_0001>

<llo_original>
// kernel: tpu_custom_call.1
$region0: #{tpu_custom_call.1}
  #allocation0 [shape = 'u32[]', space=smem, size = 0x4, offset = 0x4, fixed_abs, tag = 'smem constant byte address 0x4 - core index']
  #allocation1 [shape = 'u32[72,128]{1,0:T(1,128)}', space=vmem, size = 0x9000, scoped, tag = 'internal scratch']
  %s0 = inlined_call_operand.hbm [shape: f32[16,144], index: 0, kind: input, shape index: {}]
  %s1 = inlined_call_operand.hbm [shape: f32[16,128], index: 1, kind: input, shape index: {}]
  %s2 = inlined_call_operand.hbm [shape: f32[9,128,128], index: 2, kind: input, shape index: {}]
  %s3 = inlined_call_operand.vmem [shape: f32[1,128], index: 3, kind: input, shape index: {}]
  %s4 = inlined_call_operand.hbm [shape: f32[16,128], index: 4, kind: output, shape index: {}]
  %s5 = sld [smem:[#allocation0]]
  $region38: #{tpu_custom_call.1} parent=0
    _
  %s7 = ssub.s32 1, %s5
  %s8 = scalar_select 0, %s7, %s5
  $region1: #{tpu_custom_call.1} parent=0
    #allocation2 [shape = 'u8[16384]{0}', space=vmem, size = 0x4000, scoped, tag = 'input window, operand 0, single buffered']
    #allocation3 [shape = 's32[1]{0}', space=sflag, size = 0x4, scoped, tag = 'scoped memory for tpu_custom_call.1']
    #allocation4 [shape = 's32[1]{0}', space=sflag, size = 0x4, scoped, tag = 'scoped memory for tpu_custom_call.1']
    #allocation5 [shape = 'u8[8192]{0}', space=vmem, size = 0x2000, scoped, tag = 'input window, operand 1, single buffered']
    #allocation6 [shape = 's32[1]{0}', space=sflag, size = 0x4, scoped, tag = 'scoped memory for tpu_custom_call.1']
    #allocation7 [shape = 'u8[589824]{0}', space=vmem, size = 0x90000, scoped, tag = 'input window, operand 2, single buffered']
    #allocation8 [shape = 'u8[8192]{0}', space=vmem, size = 0x2000, scoped, tag = 'output window, operand 0, single buffered']
    %9 = vsyncpa [#allocation3], 0
    %10 = vsyncpa [#allocation6], 0
    %11 = vsyncpa [#allocation4], 0
    // Predicated region
    $region2: #{tpu_custom_call.1} parent=1 // pred_check
      _
    $region3: #{tpu_custom_call.1} parent=1 // pred_check_branch
      %13 = sbr.rel (0) target = $region5
    $region4: #{tpu_custom_call.1} parent=1 // pred_region
      %15 = vsyncadd [#allocation3], 0
      %s16 = sshll.u32 %s0, 4
      %s17 = int_to_ptr.hbm [resolvable:$true] %s16
      %s18 = sshll.u32 [#allocation2], 4
      %s19 = int_to_ptr.vmem [resolvable:$true] %s18
      %24 = dma.hbm_to_vmem [thread:$0]  %s17, 512, %s19, [#allocation3], 256, 256, 16
    $region5: #{tpu_custom_call.1} parent=1 // pred_fallthru
      _
    // Predicated region
    $region6: #{tpu_custom_call.1} parent=1 // pred_check
      _
    $region7: #{tpu_custom_call.1} parent=1 // pred_check_branch
      %26 = sbr.rel (0) target = $region9
    $region8: #{tpu_custom_call.1} parent=1 // pred_region
      %28 = vsyncadd [#allocation6], 0
      %s29 = sshll.u32 %s1, 4
      %s30 = int_to_ptr.hbm [resolvable:$true] %s29
      %s31 = sshll.u32 [#allocation5], 4
      %s32 = int_to_ptr.vmem [resolvable:$true] %s31
      %37 = dma.hbm_to_vmem [thread:$0]  %s30, 256, %s32, [#allocation6], 128, 128, 8
    $region9: #{tpu_custom_call.1} parent=1 // pred_fallthru
      _
    // Predicated region
    $region10: #{tpu_custom_call.1} parent=1 // pred_check
      _
    $region11: #{tpu_custom_call.1} parent=1 // pred_check_branch
      %39 = sbr.rel (0) target = $region13
    $region12: #{tpu_custom_call.1} parent=1 // pred_region
      %41 = vsyncadd [#allocation6], 0
      %s42 = sshll.u32 %s2, 4
      %s43 = int_to_ptr.hbm [resolvable:$true] %s42
      %s44 = sshll.u32 [#allocation7], 4
      %s45 = int_to_ptr.vmem [resolvable:$true] %s44
      %50 = dma.hbm_to_vmem [thread:$0]  %s43, 18432, %s45, [#allocation6], 128, 128, 8
    $region13: #{tpu_custom_call.1} parent=1 // pred_fallthru
      _
    // Predicated region
    $region14: #{tpu_custom_call.1} parent=1 // pred_check
      _
    $region15: #{tpu_custom_call.1} parent=1 // pred_check_branch
      %52 = sbr.rel (0) target = $region17
    $region16: #{tpu_custom_call.1} parent=1 // pred_region
      _
    $region17: #{tpu_custom_call.1} parent=1 // pred_fallthru
      _
    // Predicated region
    $region18: #{tpu_custom_call.1} parent=1 // pred_check
      _
    $region19: #{tpu_custom_call.1} parent=1 // pred_check_branch
      %54 = sbr.rel (0) target = $region21
    $region20: #{tpu_custom_call.1} parent=1 // pred_region
      %56 = dma.done [#allocation3], 512
    $region21: #{tpu_custom_call.1} parent=1 // pred_fallthru
      _
    // Predicated region
    $region22: #{tpu_custom_call.1} parent=1 // pred_check
      _
    $region23: #{tpu_custom_call.1} parent=1 // pred_check_branch
      %58 = sbr.rel (0) target = $region25
    $region24: #{tpu_custom_call.1} parent=1 // pred_region
      %60 = dma.done [#allocation6], 256
    $region25: #{tpu_custom_call.1} parent=1 // pred_fallthru
      _
    // Predicated region
    $region26: #{tpu_custom_call.1} parent=1 // pred_check
      _
    $region27: #{tpu_custom_call.1} parent=1 // pred_check_branch
      %62 = sbr.rel (0) target = $region29
    $region28: #{tpu_custom_call.1} parent=1 // pred_region
      %64 = dma.done [#allocation6], 18432
    $region29: #{tpu_custom_call.1} parent=1 // pred_fallthru
      _
    %v65 = vld [vmem:[#allocation5] sm:$0xff]
    %v66 = vld [vmem:[#allocation5 + $0x8] sm:$0xff]
    %v67 = vld [vmem:[#allocation7] sm:$0xff]
    %v68 = vld [vmem:[#allocation7 + $0x8] sm:$0xff]
    %v69 = vld [vmem:[#allocation7 + $0x10] sm:$0xff]
    %v70 = vld [vmem:[#allocation7 + $0x18] sm:$0xff]
    %v71 = vld [vmem:[#allocation7 + $0x20] sm:$0xff]
    %v72 = vld [vmem:[#allocation7 + $0x28] sm:$0xff]
    %v73 = vld [vmem:[#allocation7 + $0x30] sm:$0xff]
    %v74 = vld [vmem:[#allocation7 + $0x38] sm:$0xff]
    %v75 = vld [vmem:[#allocation7 + $0x40] sm:$0xff]
    %v76 = vld [vmem:[#allocation7 + $0x48] sm:$0xff]
    %v77 = vld [vmem:[#allocation7 + $0x50] sm:$0xff]
    %v78 = vld [vmem:[#allocation7 + $0x58] sm:$0xff]
    %v79 = vld [vmem:[#allocation7 + $0x60] sm:$0xff]
    %v80 = vld [vmem:[#allocation7 + $0x68] sm:$0xff]
    %v81 = vld [vmem:[#allocation7 + $0x70] sm:$0xff]
    %v82 = vld [vmem:[#allocation7 + $0x78] sm:$0xff]
    %83 = vmatpush.msra.mxu0 %v82
    %84 = vmatpush.msra.mxu0 %v81
    %85 = vmatpush.msra.mxu0 %v80
    %86 = vmatpush.msra.mxu0 %v79
    %87 = vmatpush.msra.mxu0 %v78
    %88 = vmatpush.msra.mxu0 %v77
    %89 = vmatpush.msra.mxu0 %v76
    %90 = vmatpush.msra.mxu0 %v75
    %91 = vmatpush.msra.mxu0 %v74
    %92 = vmatpush.msra.mxu0 %v73
    %93 = vmatpush.msra.mxu0 %v72
    %94 = vmatpush.msra.mxu0 %v71
    %95 = vmatpush.msra.mxu0 %v70
    %96 = vmatpush.msra.mxu0 %v69
    %97 = vmatpush.msra.mxu0 %v68
    %98 = vmatpush.msra.mxu0 %v67
    %99 = vmatmul.f32.gmra.mxu0 %v65
    %v100 = vpop.f32.mrf.mxu0
    %v101 = vadd.f32 0.0, %v100
    %102 = vmatmul.f32.gmra.mxu0 %v66
    %v103 = vpop.f32.mrf.mxu0
    %v104 = vadd.f32 0.0, %v103
    %105 = vdwg.mxu0
    %s106 = scalar_lea.vmem [#allocation7], 128
    %v107 = vld [vmem:[%s106] sm:$0xff]
    %v108 = vld [vmem:[%s106 + $0x8] sm:$0xff]
    %v109 = vld [vmem:[%s106 + $0x10] sm:$0xff]
    %v110 = vld [vmem:[%s106 + $0x18] sm:$0xff]
    %v111 = vld [vmem:[%s106 + $0x20] sm:$0xff]
    %v112 = vld [vmem:[%s106 + $0x28] sm:$0xff]
    %v113 = vld [vmem:[%s106 + $0x30] sm:$0xff]
    %v114 = vld [vmem:[%s106 + $0x38] sm:$0xff]
    %v115 = vld [vmem:[%s106 + $0x40] sm:$0xff]
    %v116 = vld [vmem:[%s106 + $0x48] sm:$0xff]
    %v117 = vld [vmem:[%s106 + $0x50] sm:$0xff]
    %v118 = vld [vmem:[%s106 + $0x58] sm:$0xff]
    %v119 = vld [vmem:[%s106 + $0x60] sm:$0xff]
    %v120 = vld [vmem:[%s106 + $0x68] sm:$0xff]
    %v121 = vld [vmem:[%s106 + $0x70] sm:$0xff]
    %v122 = vld [vmem:[%s106 + $0x78] sm:$0xff]
    %123 = vmatpush.msra.mxu0 %v122
    %124 = vmatpush.msra.mxu0 %v121
    %125 = vmatpush.msra.mxu0 %v120
    %126 = vmatpush.msra.mxu0 %v119
    %127 = vmatpush.msra.mxu0 %v118
    %128 = vmatpush.msra.mxu0 %v117
    %129 = vmatpush.msra.mxu0 %v116
    %130 = vmatpush.msra.mxu0 %v115
    %131 = vmatpush.msra.mxu0 %v114
    %132 = vmatpush.msra.mxu0 %v113
    %133 = vmatpush.msra.mxu0 %v112
    %134 = vmatpush.msra.mxu0 %v111
    %135 = vmatpush.msra.mxu0 %v110
    %136 = vmatpush.msra.mxu0 %v109
    %137 = vmatpush.msra.mxu0 %v108
    %138 = vmatpush.msra.mxu0 %v107
    %139 = vmatmul.f32.gmra.mxu0 %v65
    %v140 = vpop.f32.mrf.mxu0
    %v141 = vadd.f32 0.0, %v140
    %142 = vmatmul.f32.gmra.mxu0 %v66
    %v143 = vpop.f32.mrf.mxu0
    %v144 = vadd.f32 0.0, %v143
    %145 = vdwg.mxu0
    %s146 = scalar_lea.vmem [#allocation7], 256
    %v147 = vld [vmem:[%s146] sm:$0xff]
    %v148 = vld [vmem:[%s146 + $0x8] sm:$0xff]
    %v149 = vld [vmem:[%s146 + $0x10] sm:$0xff]
    %v150 = vld [vmem:[%s146 + $0x18] sm:$0xff]
    %v151 = vld [vmem:[%s146 + $0x20] sm:$0xff]
    %v152 = vld [vmem:[%s146 + $0x28] sm:$0xff]
    %v153 = vld [vmem:[%s146 + $0x30] sm:$0xff]
    %v154 = vld [vmem:[%s146 + $0x38] sm:$0xff]
    %v155 = vld [vmem:[%s146 + $0x40] sm:$0xff]
    %v156 = vld [vmem:[%s146 + $0x48] sm:$0xff]
    %v157 = vld [vmem:[%s146 + $0x50] sm:$0xff]
    %v158 = vld [vmem:[%s146 + $0x58] sm:$0xff]
    %v159 = vld [vmem:[%s146 + $0x60] sm:$0xff]
    %v160 = vld [vmem:[%s146 + $0x68] sm:$0xff]
    %v161 = vld [vmem:[%s146 + $0x70] sm:$0xff]
    %v162 = vld [vmem:[%s146 + $0x78] sm:$0xff]
    %163 = vmatpush.msra.mxu0 %v162
    %164 = vmatpush.msra.mxu0 %v161
    %165 = vmatpush.msra.mxu0 %v160
    %166 = vmatpush.msra.mxu0 %v159
    %167 = vmatpush.msra.mxu0 %v158
    %168 = vmatpush.msra.mxu0 %v157
    %169 = vmatpush.msra.mxu0 %v156
    %170 = vmatpush.msra.mxu0 %v155
    %171 = vmatpush.msra.mxu0 %v154
    %172 = vmatpush.msra.mxu0 %v153
    %173 = vmatpush.msra.mxu0 %v152
    %174 = vmatpush.msra.mxu0 %v151
    %175 = vmatpush.msra.mxu0 %v150
    %176 = vmatpush.msra.mxu0 %v149
    %177 = vmatpush.msra.mxu0 %v148
    %178 = vmatpush.msra.mxu0 %v147
    %179 = vmatmul.f32.gmra.mxu0 %v65
    %v180 = vpop.f32.mrf.mxu0
    %v181 = vadd.f32 0.0, %v180
    %182 = vmatmul.f32.gmra.mxu0 %v66
    %v183 = vpop.f32.mrf.mxu0
    %v184 = vadd.f32 0.0, %v183
    %185 = vdwg.mxu0
    %s186 = scalar_lea.vmem [#allocation7], 384
    %v187 = vld [vmem:[%s186] sm:$0xff]
    %v188 = vld [vmem:[%s186 + $0x8] sm:$0xff]
    %v189 = vld [vmem:[%s186 + $0x10] sm:$0xff]
    %v190 = vld [vmem:[%s186 + $0x18] sm:$0xff]
    %v191 = vld [vmem:[%s186 + $0x20] sm:$0xff]
    %v192 = vld [vmem:[%s186 + $0x28] sm:$0xff]
    %v193 = vld [vmem:[%s186 + $0x30] sm:$0xff]
    %v194 = vld [vmem:[%s186 + $0x38] sm:$0xff]
    %v195 = vld [vmem:[%s186 + $0x40] sm:$0xff]
    %v196 = vld [vmem:[%s186 + $0x48] sm:$0xff]
    %v197 = vld [vmem:[%s186 + $0x50] sm:$0xff]
    %v198 = vld [vmem:[%s186 + $0x58] sm:$0xff]
    %v199 = vld [vmem:[%s186 + $0x60] sm:$0xff]
    %v200 = vld [vmem:[%s186 + $0x68] sm:$0xff]
    %v201 = vld [vmem:[%s186 + $0x70] sm:$0xff]
    %v202 = vld [vmem:[%s186 + $0x78] sm:$0xff]
    %203 = vmatpush.msra.mxu0 %v202
    %204 = vmatpush.msra.mxu0 %v201
    %205 = vmatpush.msra.mxu0 %v200
    %206 = vmatpush.msra.mxu0 %v199
    %207 = vmatpush.msra.mxu0 %v198
    %208 = vmatpush.msra.mxu0 %v197
    %209 = vmatpush.msra.mxu0 %v196
    %210 = vmatpush.msra.mxu0 %v195
    %211 = vmatpush.msra.mxu0 %v194
    %212 = vmatpush.msra.mxu0 %v193
    %213 = vmatpush.msra.mxu0 %v192
    %214 = vmatpush.msra.mxu0 %v191
    %215 = vmatpush.msra.mxu0 %v190
    %216 = vmatpush.msra.mxu0 %v189
    %217 = vmatpush.msra.mxu0 %v188
    %218 = vmatpush.msra.mxu0 %v187
    %219 = vmatmul.f32.gmra.mxu0 %v65
    %v220 = vpop.f32.mrf.mxu0
    %v221 = vadd.f32 0.0, %v220
    %222 = vmatmul.f32.gmra.mxu0 %v66
    %v223 = vpop.f32.mrf.mxu0
    %v224 = vadd.f32 0.0, %v223
    %225 = vdwg.mxu0
    %s226 = scalar_lea.vmem [#allocation7], 512
    %v227 = vld [vmem:[%s226] sm:$0xff]
    %v228 = vld [vmem:[%s226 + $0x8] sm:$0xff]
    %v229 = vld [vmem:[%s226 + $0x10] sm:$0xff]
    %v230 = vld [vmem:[%s226 + $0x18] sm:$0xff]
    %v231 = vld [vmem:[%s226 + $0x20] sm:$0xff]
    %v232 = vld [vmem:[%s226 + $0x28] sm:$0xff]
    %v233 = vld [vmem:[%s226 + $0x30] sm:$0xff]
    %v234 = vld [vmem:[%s226 + $0x38] sm:$0xff]
    %v235 = vld [vmem:[%s226 + $0x40] sm:$0xff]
    %v236 = vld [vmem:[%s226 + $0x48] sm:$0xff]
    %v237 = vld [vmem:[%s226 + $0x50] sm:$0xff]
    %v238 = vld [vmem:[%s226 + $0x58] sm:$0xff]
    %v239 = vld [vmem:[%s226 + $0x60] sm:$0xff]
    %v240 = vld [vmem:[%s226 + $0x68] sm:$0xff]
    %v241 = vld [vmem:[%s226 + $0x70] sm:$0xff]
    %v242 = vld [vmem:[%s226 + $0x78] sm:$0xff]
    %243 = vmatpush.msra.mxu0 %v242
    %244 = vmatpush.msra.mxu0 %v241
    %245 = vmatpush.msra.mxu0 %v240
    %246 = vmatpush.msra.mxu0 %v239
    %247 = vmatpush.msra.mxu0 %v238
    %248 = vmatpush.msra.mxu0 %v237
    %249 = vmatpush.msra.mxu0 %v236
    %250 = vmatpush.msra.mxu0 %v235
    %251 = vmatpush.msra.mxu0 %v234
    %252 = vmatpush.msra.mxu0 %v233
    %253 = vmatpush.msra.mxu0 %v232
    %254 = vmatpush.msra.mxu0 %v231
    %255 = vmatpush.msra.mxu0 %v230
    %256 = vmatpush.msra.mxu0 %v229
    %257 = vmatpush.msra.mxu0 %v228
    %258 = vmatpush.msra.mxu0 %v227
    %259 = vmatmul.f32.gmra.mxu0 %v65
    %v260 = vpop.f32.mrf.mxu0
    %v261 = vadd.f32 0.0, %v260
    %262 = vmatmul.f32.gmra.mxu0 %v66
    %v263 = vpop.f32.mrf.mxu0
    %v264 = vadd.f32 0.0, %v263
    %265 = vdwg.mxu0
    %s266 = scalar_lea.vmem [#allocation7], 640
    %v267 = vld [vmem:[%s266] sm:$0xff]
    %v268 = vld [vmem:[%s266 + $0x8] sm:$0xff]
    %v269 = vld [vmem:[%s266 + $0x10] sm:$0xff]
    %v270 = vld [vmem:[%s266 + $0x18] sm:$0xff]
    %v271 = vld [vmem:[%s266 + $0x20] sm:$0xff]
    %v272 = vld [vmem:[%s266 + $0x28] sm:$0xff]
    %v273 = vld [vmem:[%s266 + $0x30] sm:$0xff]
    %v274 = vld [vmem:[%s266 + $0x38] sm:$0xff]
    %v275 = vld [vmem:[%s266 + $0x40] sm:$0xff]
    %v276 = vld [vmem:[%s266 + $0x48] sm:$0xff]
    %v277 = vld [vmem:[%s266 + $0x50] sm:$0xff]
    %v278 = vld [vmem:[%s266 + $0x58] sm:$0xff]
    %v279 = vld [vmem:[%s266 + $0x60] sm:$0xff]
    %v280 = vld [vmem:[%s266 + $0x68] sm:$0xff]
    %v281 = vld [vmem:[%s266 + $0x70] sm:$0xff]
    %v282 = vld [vmem:[%s266 + $0x78] sm:$0xff]
    %283 = vmatpush.msra.mxu0 %v282
    %284 = vmatpush.msra.mxu0 %v281
    %285 = vmatpush.msra.mxu0 %v280
    %286 = vmatpush.msra.mxu0 %v279
    %287 = vmatpush.msra.mxu0 %v278
    %288 = vmatpush.msra.mxu0 %v277
    %289 = vmatpush.msra.mxu0 %v276
    %290 = vmatpush.msra.mxu0 %v275
    %291 = vmatpush.msra.mxu0 %v274
    %292 = vmatpush.msra.mxu0 %v273
    %293 = vmatpush.msra.mxu0 %v272
    %294 = vmatpush.msra.mxu0 %v271
    %295 = vmatpush.msra.mxu0 %v270
    %296 = vmatpush.msra.mxu0 %v269
    %297 = vmatpush.msra.mxu0 %v268
    %298 = vmatpush.msra.mxu0 %v267
    %299 = vmatmul.f32.gmra.mxu0 %v65
    %v300 = vpop.f32.mrf.mxu0
    %v301 = vadd.f32 0.0, %v300
    %302 = vmatmul.f32.gmra.mxu0 %v66
    %v303 = vpop.f32.mrf.mxu0
    %v304 = vadd.f32 0.0, %v303
    %305 = vdwg.mxu0
    %s306 = scalar_lea.vmem [#allocation7], 768
    %v307 = vld [vmem:[%s306] sm:$0xff]
    %v308 = vld [vmem:[%s306 + $0x8] sm:$0xff]
    %v309 = vld [vmem:[%s306 + $0x10] sm:$0xff]
    %v310 = vld [vmem:[%s306 + $0x18] sm:$0xff]
    %v311 = vld [vmem:[%s306 + $0x20] sm:$0xff]
    %v312 = vld [vmem:[%s306 + $0x28] sm:$0xff]
    %v313 = vld [vmem:[%s306 + $0x30] sm:$0xff]
    %v314 = vld [vmem:[%s306 + $0x38] sm:$0xff]
    %v315 = vld [vmem:[%s306 + $0x40] sm:$0xff]
    %v316 = vld [vmem:[%s306 + $0x48] sm:$0xff]
    %v317 = vld [vmem:[%s306 + $0x50] sm:$0xff]
    %v318 = vld [vmem:[%s306 + $0x58] sm:$0xff]
    %v319 = vld [vmem:[%s306 + $0x60] sm:$0xff]
    %v320 = vld [vmem:[%s306 + $0x68] sm:$0xff]
    %v321 = vld [vmem:[%s306 + $0x70] sm:$0xff]
    %v322 = vld [vmem:[%s306 + $0x78] sm:$0xff]
    %323 = vmatpush.msra.mxu0 %v322
    %324 = vmatpush.msra.mxu0 %v321
    %325 = vmatpush.msra.mxu0 %v320
    %326 = vmatpush.msra.mxu0 %v319
    %327 = vmatpush.msra.mxu0 %v318
    %328 = vmatpush.msra.mxu0 %v317
    %329 = vmatpush.msra.mxu0 %v316
    %330 = vmatpush.msra.mxu0 %v315
    %331 = vmatpush.msra.mxu0 %v314
    %332 = vmatpush.msra.mxu0 %v313
    %333 = vmatpush.msra.mxu0 %v312
    %334 = vmatpush.msra.mxu0 %v311
    %335 = vmatpush.msra.mxu0 %v310
    %336 = vmatpush.msra.mxu0 %v309
    %337 = vmatpush.msra.mxu0 %v308
    %338 = vmatpush.msra.mxu0 %v307
    %339 = vmatmul.f32.gmra.mxu0 %v65
    %v340 = vpop.f32.mrf.mxu0
    %v341 = vadd.f32 0.0, %v340
    %342 = vmatmul.f32.gmra.mxu0 %v66
    %v343 = vpop.f32.mrf.mxu0
    %v344 = vadd.f32 0.0, %v343
    %345 = vdwg.mxu0
    %s346 = scalar_lea.vmem [#allocation7], 896
    %v347 = vld [vmem:[%s346] sm:$0xff]
    %v348 = vld [vmem:[%s346 + $0x8] sm:$0xff]
    %v349 = vld [vmem:[%s346 + $0x10] sm:$0xff]
    %v350 = vld [vmem:[%s346 + $0x18] sm:$0xff]
    %v351 = vld [vmem:[%s346 + $0x20] sm:$0xff]
    %v352 = vld [vmem:[%s346 + $0x28] sm:$0xff]
    %v353 = vld [vmem:[%s346 + $0x30] sm:$0xff]
    %v354 = vld [vmem:[%s346 + $0x38] sm:$0xff]
    %v355 = vld [vmem:[%s346 + $0x40] sm:$0xff]
    %v356 = vld [vmem:[%s346 + $0x48] sm:$0xff]
    %v357 = vld [vmem:[%s346 + $0x50] sm:$0xff]
    %v358 = vld [vmem:[%s346 + $0x58] sm:$0xff]
    %v359 = vld [vmem:[%s346 + $0x60] sm:$0xff]
    %v360 = vld [vmem:[%s346 + $0x68] sm:$0xff]
    %v361 = vld [vmem:[%s346 + $0x70] sm:$0xff]
    %v362 = vld [vmem:[%s346 + $0x78] sm:$0xff]
    %363 = vmatpush.msra.mxu0 %v362
    %364 = vmatpush.msra.mxu0 %v361
    %365 = vmatpush.msra.mxu0 %v360
    %366 = vmatpush.msra.mxu0 %v359
    %367 = vmatpush.msra.mxu0 %v358
    %368 = vmatpush.msra.mxu0 %v357
    %369 = vmatpush.msra.mxu0 %v356
    %370 = vmatpush.msra.mxu0 %v355
    %371 = vmatpush.msra.mxu0 %v354
    %372 = vmatpush.msra.mxu0 %v353
    %373 = vmatpush.msra.mxu0 %v352
    %374 = vmatpush.msra.mxu0 %v351
    %375 = vmatpush.msra.mxu0 %v350
    %376 = vmatpush.msra.mxu0 %v349
    %377 = vmatpush.msra.mxu0 %v348
    %378 = vmatpush.msra.mxu0 %v347
    %379 = vmatmul.f32.gmra.mxu0 %v65
    %v380 = vpop.f32.mrf.mxu0
    %v381 = vadd.f32 0.0, %v380
    %382 = vmatmul.f32.gmra.mxu0 %v66
    %v383 = vpop.f32.mrf.mxu0
    %v384 = vadd.f32 0.0, %v383
    %385 = vdwg.mxu0
    %s386 = scalar_lea.vmem [#allocation7], 1024
    %v387 = vld [vmem:[%s386] sm:$0xff]
    %v388 = vld [vmem:[%s386 + $0x8] sm:$0xff]
    %v389 = vld [vmem:[%s386 + $0x10] sm:$0xff]
    %v390 = vld [vmem:[%s386 + $0x18] sm:$0xff]
    %v391 = vld [vmem:[%s386 + $0x20] sm:$0xff]
    %v392 = vld [vmem:[%s386 + $0x28] sm:$0xff]
    %v393 = vld [vmem:[%s386 + $0x30] sm:$0xff]
    %v394 = vld [vmem:[%s386 + $0x38] sm:$0xff]
    %v395 = vld [vmem:[%s386 + $0x40] sm:$0xff]
    %v396 = vld [vmem:[%s386 + $0x48] sm:$0xff]
    %v397 = vld [vmem:[%s386 + $0x50] sm:$0xff]
    %v398 = vld [vmem:[%s386 + $0x58] sm:$0xff]
    %v399 = vld [vmem:[%s386 + $0x60] sm:$0xff]
    %v400 = vld [vmem:[%s386 + $0x68] sm:$0xff]
    %v401 = vld [vmem:[%s386 + $0x70] sm:$0xff]
    %v402 = vld [vmem:[%s386 + $0x78] sm:$0xff]
    %403 = vmatpush.msra.mxu0 %v402
    %404 = vmatpush.msra.mxu0 %v401
    %405 = vmatpush.msra.mxu0 %v400
    %406 = vmatpush.msra.mxu0 %v399
    %407 = vmatpush.msra.mxu0 %v398
    %408 = vmatpush.msra.mxu0 %v397
    %409 = vmatpush.msra.mxu0 %v396
    %410 = vmatpush.msra.mxu0 %v395
    %411 = vmatpush.msra.mxu0 %v394
    %412 = vmatpush.msra.mxu0 %v393
    %413 = vmatpush.msra.mxu0 %v392
    %414 = vmatpush.msra.mxu0 %v391
    %415 = vmatpush.msra.mxu0 %v390
    %416 = vmatpush.msra.mxu0 %v389
    %417 = vmatpush.msra.mxu0 %v388
    %418 = vmatpush.msra.mxu0 %v387
    %419 = vmatmul.f32.gmra.mxu0 %v65
    %v420 = vpop.f32.mrf.mxu0
    %v421 = vadd.f32 0.0, %v420
    %422 = vmatmul.f32.gmra.mxu0 %v66
    %v423 = vpop.f32.mrf.mxu0
    %v424 = vadd.f32 0.0, %v423
    %425 = vdwg.mxu0
    %v426 = vld [vmem:[#allocation2] sm:$0xff]
    %v427 = vld [vmem:[#allocation2 + $0x8] sm:$0xff]
    %v428 = vld [vmem:[#allocation2 + $0x10] sm:$0xff]
    %v429 = vld [vmem:[#allocation2 + $0x18] sm:$0xff]
    %v430 = vld [vmem:[%s3] sm:$0x1]
    %v432 = vperm.slane %v430, 0
    %vm434 = vcmask 130048
    %v436 = vsel %vm434, %v427, 0
    %v439 = vsel %vm434, %v429, 0
    %441 = vmatpush.msra.mxu0 %v384
    %442 = vmatpush.msra.mxu0 %v381
    %443 = vmatpush.msra.mxu0 %v344
    %444 = vmatpush.msra.mxu0 %v341
    %445 = vmatpush.msra.mxu0 %v304
    %446 = vmatpush.msra.mxu0 %v301
    %447 = vmatpush.msra.mxu0 %v264
    %448 = vmatpush.msra.mxu0 %v261
    %449 = vmatpush.msra.mxu0 %v224
    %450 = vmatpush.msra.mxu0 %v221
    %451 = vmatpush.msra.mxu0 %v184
    %452 = vmatpush.msra.mxu0 %v181
    %453 = vmatpush.msra.mxu0 %v144
    %454 = vmatpush.msra.mxu0 %v141
    %455 = vmatpush.msra.mxu0 %v104
    %456 = vmatpush.msra.mxu0 %v101
    %457 = vmatmul.f32.gmra.mxu0 %v426
    %v458 = vpop.f32.mrf.mxu0
    %v459 = vadd.f32 %v432, %v458
    %460 = vmatmul.f32.gmra.mxu0 %v428
    %v461 = vpop.f32.mrf.mxu0
    %v462 = vadd.f32 %v432, %v461
    %463 = vdwg.mxu0
    %464 = vmatpush.msra.mxu0 0.0
    %465 = vmatpush.msra.mxu0 0.0
    %466 = vmatpush.msra.mxu0 0.0
    %467 = vmatpush.msra.mxu0 0.0
    %468 = vmatpush.msra.mxu0 0.0
    %469 = vmatpush.msra.mxu0 0.0
    %470 = vmatpush.msra.mxu0 0.0
    %471 = vmatpush.msra.mxu0 0.0
    %472 = vmatpush.msra.mxu0 0.0
    %473 = vmatpush.msra.mxu0 0.0
    %474 = vmatpush.msra.mxu0 0.0
    %475 = vmatpush.msra.mxu0 0.0
    %476 = vmatpush.msra.mxu0 0.0
    %477 = vmatpush.msra.mxu0 0.0
    %478 = vmatpush.msra.mxu0 %v424
    %479 = vmatpush.msra.mxu0 %v421
    %480 = vmatmul.f32.gmra.mxu0 %v436
    %v481 = vpop.f32.mrf.mxu0
    %v482 = vadd.f32 %v459, %v481
    %483 = vmatmul.f32.gmra.mxu0 %v439
    %v484 = vpop.f32.mrf.mxu0
    %v485 = vadd.f32 %v462, %v484
    %486 = vdwg.mxu0
    %487 = vst [vmem:[#allocation8] sm:$0xff] %v482
    %488 = vst [vmem:[#allocation8 + $0x8] sm:$0xff] %v485
    // Predicated region
    $region30: #{tpu_custom_call.1} parent=1 // pred_check
      _
    $region31: #{tpu_custom_call.1} parent=1 // pred_check_branch
      %490 = sbr.rel (0) target = $region33
    $region32: #{tpu_custom_call.1} parent=1 // pred_region
      %492 = vsyncadd [#allocation4], 0
      %s493 = sshll.u32 [#allocation8], 4
      %s494 = int_to_ptr.vmem [resolvable:$true] %s493
      %s495 = sshll.u32 %s4, 4
      %s496 = int_to_ptr.hbm [resolvable:$true] %s495
      %501 = dma.vmem_to_hbm [thread:$0]  %s494, 256, %s496, [#allocation4], 128, 128, 8
    $region33: #{tpu_custom_call.1} parent=1 // pred_fallthru
      _
    // Predicated region
    $region34: #{tpu_custom_call.1} parent=1 // pred_check
      _
    $region35: #{tpu_custom_call.1} parent=1 // pred_check_branch
      %503 = sbr.rel (0) target = $region37
    $region36: #{tpu_custom_call.1} parent=1 // pred_region
      %505 = dma.done [#allocation4], 256
    $region37: #{tpu_custom_call.1} parent=1 // pred_fallthru
      _
    %506 = vsyncpa [#allocation3], 1
    %507 = vsyncpa [#allocation6], 1
    %508 = vsyncpa [#allocation4], 1

</llo_original>
